<compile_context>
chip_gen: v7x
topology: tpu7x:2x2x1
jax: 0.10.0
libtpu: 0.0.40
codegen_flags: <defaults>
</compile_context>

<pallas_src>
import functools

import jax
import jax.numpy as jnp
from jax.experimental import pallas as pl
from jax.experimental.pallas import tpu as pltpu

LANES = 128  # lane width of the parameter slab / output slab


def _align8(r):
    return (r + 7) & ~7


def slab_layout(din, hid, passes):
    """Row offsets of each section inside the (R, LANES) parameter slab."""
    off, r = {}, 0
    off['wenc'] = r; r = _align8(r + din)            # (Din, H)  lanes [0:H)
    off['benc'] = r; r = _align8(r + 1)              # (1, H)
    off['wf'] = r;   r = _align8(r + passes * hid)   # P x (H, H)
    off['wc'] = r;   r = _align8(r + passes * hid)   # P x (H, H)
    off['bfc'] = r;  r = _align8(r + passes)         # (P, H)  rows = bf[p]+bc[p]
    off['vp'] = r;   r = _align8(r + 3)              # (3, H)  value-head fold
    off['wact'] = r; r = _align8(r + hid)            # (H, 128) zero-padded cols
    off['bact'] = r; r = _align8(r + 1)              # (1, 128) pad cols = -1e30
    off['rows'] = r
    return off


# ----------------------------- Pallas kernel -------------------------------- #

def commnet_kernel(n_agents, hid, n_act, passes, din, x_ref, p_ref, out_ref):
    """Fused CommNet forward.  Whole problem resides in VMEM, single grid step.

    x_ref  : (B*N, Din)   observations
    p_ref  : (R, 128)     packed parameter slab (see slab_layout)
    out_ref: (B*N, 128)   [log_softmax(A) | value(1) | comm_sum(H) | zeros]
    """
    N, H, A, P, Din = n_agents, hid, n_act, passes, din
    BN = x_ref.shape[0]
    B = BN // N
    off = slab_layout(Din, H, P)
    f32 = jnp.float32

    # --- encoder + tanh (forward_state_encoder, non-recurrent branch) ---
    wenc = p_ref[off['wenc']:off['wenc'] + Din, 0:H]        # (Din, H)
    benc = p_ref[off['benc']:off['benc'] + 1, 0:H]          # (1, H)
    xe = jnp.tanh(jnp.dot(x_ref[...], wenc, preferred_element_type=f32) + benc)
    hidden = xe                                             # hidden_state == encoded x

    # --- comm mask built in-kernel: kron(eye(B), ones(N,N) - eye(N)) ---
    # (block-membership via compares; avoids vector integer division and any
    #  host-built / DMA'd quadratic mask)
    row = jax.lax.broadcasted_iota(jnp.int32, (BN, BN), 0)
    col = jax.lax.broadcasted_iota(jnp.int32, (BN, BN), 1)

    def _in_block(z, b):
        return (z >= b * N) & (z < (b + 1) * N)

    same = _in_block(row, 0) & _in_block(col, 0)
    for b in range(1, B):                                   # static unroll; B small
        same = same | (_in_block(row, b) & _in_block(col, b))
    cmask = jnp.where(same & (row != col), f32(1.0), f32(0.0))

    # --- communication passes (static unroll; P is small) ---
    # TODO(synk): at large BN replace the (BN,BN) dot with rowsum-minus-self.
    for p in range(P):
        # comm_sum[b*N+j] = sum_{i != j} hidden[b*N+i]  (agent masks all ones)
        comm_sum = jnp.dot(cmask, hidden, preferred_element_type=f32)
        wf_p = p_ref[off['wf'] + p * H:off['wf'] + (p + 1) * H, 0:H]
        wc_p = p_ref[off['wc'] + p * H:off['wc'] + (p + 1) * H, 0:H]
        bfc_p = p_ref[off['bfc'] + p:off['bfc'] + p + 1, 0:H]   # bf[p] + bc[p]
        hidden = jnp.tanh(
            xe
            + jnp.dot(hidden, wf_p, preferred_element_type=f32)
            + jnp.dot(comm_sum, wc_p, preferred_element_type=f32)
            + bfc_p)

    # --- discrete action head (128-lane padded) + exact padded log_softmax ---
    wact = p_ref[off['wact']:off['wact'] + H, :]            # (H, 128), zero pad cols
    bact = p_ref[off['bact']:off['bact'] + 1, :]            # (1, 128), pad = -1e30
    logits = jnp.dot(hidden, wact, preferred_element_type=f32) + bact
    m = jnp.max(logits, axis=-1, keepdims=True)
    lse = m + jnp.log(jnp.sum(jnp.exp(logits - m), axis=-1, keepdims=True))
    logsm = logits - lse                                    # exact on the real A lanes

    # --- value head: h @ wv_h + comm_sum @ (wc[-1] @ wv_c) + bv_eff ---
    vp = p_ref[off['vp']:off['vp'] + 3, 0:H]                # (3, H)
    val = (jnp.sum(hidden * vp[0:1, :], axis=-1, keepdims=True)
           + jnp.sum(comm_sum * vp[1:2, :], axis=-1, keepdims=True)
           + vp[2:3, 0:1])

    # --- single lane-dense (BN, 128) output slab, one unmasked store ---
    pad = jnp.zeros((BN, LANES - A - 1 - H), f32)
    out_ref[...] = jnp.concatenate([logsm[:, :A], val, comm_sum, pad], axis=-1)


# ------------------------------- wrappers ------------------------------------ #

def pack_params(params):
    """One-time packing of PyTorch-style (pre-transposed) weights into the slab."""
    f32 = jnp.float32
    din, H = params['wenc'].shape
    P = params['wf'].shape[0]
    A = params['wh'].shape[1]
    assert H <= LANES and A + 1 + H <= LANES
    off = slab_layout(din, H, P)
    slab = jnp.zeros((off['rows'], LANES), f32)
    slab = slab.at[off['wenc']:off['wenc'] + din, :H].set(params['wenc'].astype(f32))
    slab = slab.at[off['benc'], :H].set(params['benc'][0].astype(f32))
    slab = slab.at[off['wf']:off['wf'] + P * H, :H].set(
        params['wf'].reshape(P * H, H).astype(f32))
    slab = slab.at[off['wc']:off['wc'] + P * H, :H].set(
        params['wc'].reshape(P * H, H).astype(f32))
    slab = slab.at[off['bfc']:off['bfc'] + P, :H].set(
        (params['bf'] + params['bc']).reshape(P, H).astype(f32))
    # value head fold: val = h@wv[:H] + c@wv[H:] + bv,  c = comm_sum@wc[-1] + bc[-1]
    wv_h = params['wv'][:H, 0]
    wv_c = params['wv'][H:, :]
    wv_c_eff = (params['wc'][P - 1] @ wv_c)[:, 0]
    bv_eff = params['bv'][0, 0] + (params['bc'][P - 1] @ wv_c)[0, 0]
    slab = slab.at[off['vp'], :H].set(wv_h.astype(f32))
    slab = slab.at[off['vp'] + 1, :H].set(wv_c_eff.astype(f32))
    slab = slab.at[off['vp'] + 2, 0].set(bv_eff.astype(f32))
    # action head padded to 128 lanes; pad bias = -1e30 keeps log_softmax exact
    slab = slab.at[off['wact']:off['wact'] + H, :A].set(params['wh'].astype(f32))
    slab = slab.at[off['bact'], :].set(jnp.full((LANES,), -1e30, f32))
    slab = slab.at[off['bact'], :A].set(params['bh'][0].astype(f32))
    return slab


def commnet_forward(x, slab, *, hid_size, n_actions, comm_passes):
    """x: (B, N, Din) observations; slab: packed params from pack_params()."""
    B, N, Din = x.shape
    H, A, P = hid_size, n_actions, comm_passes
    BN = B * N
    assert P >= 1 and A + 1 + H <= LANES

    kern = functools.partial(commnet_kernel, N, H, A, P, Din)
    vmem = lambda: pl.BlockSpec(memory_space=pltpu.MemorySpace.VMEM)
    out = pl.pallas_call(
        kern,
        out_shape=jax.ShapeDtypeStruct((BN, LANES), jnp.float32),
        in_specs=[vmem(), vmem()],
        out_specs=vmem(),
    )(x.reshape(BN, Din).astype(jnp.float32), slab)

    act = out[:, :A].reshape(B, N, A)
    val = out[:, A:A + 1].reshape(B, N, 1)
    comm_sum = out[:, A + 1:A + 1 + H].reshape(B, N, H)
    agent_mask_1_dim = jnp.ones((N,), jnp.float32)          # no alive_mask in info
    return act, val, comm_sum, agent_mask_1_dim


# ----------------------- pure-JAX reference (for check) --------------------- #

def commnet_reference(x, params, comm_passes):
    """Faithful port of the PyTorch forward (target config), original algebra."""
    B, N, Din = x.shape
    H = params['wenc'].shape[1]
    mask = jnp.ones((N, N), jnp.float32) - jnp.eye(N, dtype=jnp.float32)
    xe = jnp.tanh(x.reshape(B * N, Din) @ params['wenc'] + params['benc'])
    hidden = xe
    c = jnp.zeros((B * N, H), jnp.float32)
    comm_sum = jnp.zeros((B, N, H), jnp.float32)
    for p in range(comm_passes):
        hid3 = hidden.reshape(B, N, H)
        comm_sum = jnp.einsum('ij,bih->bjh', mask, hid3)
        c = comm_sum.reshape(B * N, H) @ params['wc'][p] + params['bc'][p]
        f = hidden @ params['wf'][p] + params['bf'][p]
        hidden = jnp.tanh(xe + f + c)
    hc = jnp.concatenate([hidden, c], axis=-1)
    val = (hc @ params['wv'] + params['bv']).reshape(B, N, 1)
    logits = hidden @ params['wh'] + params['bh']
    act = jax.nn.log_softmax(logits, axis=-1).reshape(B, N, -1)
    return act, val, comm_sum


# --------------------------------- main -------------------------------------- #

def make_params(key, num_inputs, hid_size, comm_passes, n_actions):
    ks = jax.random.split(key, 10)
    std = 0.1
    H, Din, P, A = hid_size, num_inputs, comm_passes, n_actions
    # Linear weights stored pre-transposed: (in_features, out_features).
    return {
        'wenc': jax.random.normal(ks[0], (Din, H), jnp.float32) * std,
        'benc': jax.random.normal(ks[1], (1, H), jnp.float32) * std,
        'wf':   jax.random.normal(ks[2], (P, H, H), jnp.float32) * std,
        'bf':   jax.random.normal(ks[3], (P, 1, H), jnp.float32) * std,
        'wc':   jax.random.normal(ks[4], (P, H, H), jnp.float32) * std,
        'bc':   jax.random.normal(ks[5], (P, 1, H), jnp.float32) * std,
        'wv':   jax.random.normal(ks[6], (2 * H, 1), jnp.float32) * std,
        'bv':   jax.random.normal(ks[7], (1, 1), jnp.float32) * std,
        'wh':   jax.random.normal(ks[8], (H, A), jnp.float32) * std,
        'bh':   jax.random.normal(ks[9], (1, A), jnp.float32) * std,
    }


if __name__ == "__main__":
    B, N, DIN, H, P, A = 2, 8, 16, 32, 2, 6

    key = jax.random.PRNGKey(0)
    kx, kp = jax.random.split(key)
    x = jax.random.normal(kx, (B, N, DIN), jnp.float32)
    params = make_params(kp, DIN, H, P, A)

    # one-time parameter packing (hoisted out of the per-step path)
    slab = jax.block_until_ready(pack_params(params))
    fwd = jax.jit(functools.partial(commnet_forward,
                                    hid_size=H, n_actions=A, comm_passes=P))

    act, val, comm_sum, agent_mask_1d = fwd(x, slab)
    jax.block_until_ready((act, val, comm_sum))

    act_r, val_r, comm_r = commnet_reference(x, params, P)
    assert act.shape == (B, N, A) and val.shape == (B, N, 1)
    assert comm_sum.shape == (B, N, H) and agent_mask_1d.shape == (N,)
    assert jnp.allclose(act, act_r, rtol=1e-2, atol=1e-2)
    assert jnp.allclose(val, val_r, rtol=1e-2, atol=1e-2)
    assert jnp.allclose(comm_sum, comm_r, rtol=1e-2, atol=1e-2)

    print("KERNEL_OK")
</pallas_src>

<mosaic_0001>
module attributes {stable_mosaic.version = 11 : i64} {
  func.func @commnet_kernel(%arg0: memref<16x16xf32, #tpu.memory_space<vmem>>, %arg1: memref<208x128xf32, #tpu.memory_space<vmem>>, %arg2: memref<16x128xf32, #tpu.memory_space<vmem>>) attributes {dimension_semantics = [], scalar_prefetch = 0 : i64, scratch_operands = 0 : i64, tpu.core_type = #tpu.core_type<tc>} {
    %c0 = arith.constant 0 : index
    %c0_0 = arith.constant 0 : index
    %0 = vector.load %arg1[%c0, %c0_0] : memref<208x128xf32, #tpu.memory_space<vmem>>, vector<16x32xf32>
    %c16 = arith.constant 16 : index
    %c0_1 = arith.constant 0 : index
    %1 = vector.load %arg1[%c16, %c0_1] : memref<208x128xf32, #tpu.memory_space<vmem>>, vector<1x32xf32>
    %c0_2 = arith.constant 0 : index
    %c0_3 = arith.constant 0 : index
    %2 = vector.load %arg0[%c0_2, %c0_3] : memref<16x16xf32, #tpu.memory_space<vmem>>, vector<16x16xf32>
    %cst = arith.constant dense<0.000000e+00> : vector<16x32xf32>
    %3 = tpu.matmul %2, %0, %cst {dimension_numbers = #tpu.dot_dimension_numbers<[1], [0], [0], [1], [0, 0, 1, 1], [], []>} : vector<16x16xf32>, vector<16x32xf32>, vector<16x32xf32> -> vector<16x32xf32>
    %4 = vector.broadcast %1 : vector<1x32xf32> to vector<16x32xf32>
    %5 = arith.addf %3, %4 : vector<16x32xf32>
    %6 = math.tanh %5 : vector<16x32xf32>
    %7 = tpu.iota {dimensions = array<i32: 0>} : vector<16x16xi32>
    %8 = tpu.iota {dimensions = array<i32: 1>} : vector<16x16xi32>
    %c0_i32 = arith.constant 0 : i32
    %9 = vector.broadcast %c0_i32 : i32 to vector<16x16xi32>
    %10 = arith.cmpi sge, %7, %9 : vector<16x16xi32>
    %c8_i32 = arith.constant 8 : i32
    %11 = vector.broadcast %c8_i32 : i32 to vector<16x16xi32>
    %12 = arith.cmpi slt, %7, %11 : vector<16x16xi32>
    %13 = arith.andi %10, %12 : vector<16x16xi1>
    %c0_i32_4 = arith.constant 0 : i32
    %14 = vector.broadcast %c0_i32_4 : i32 to vector<16x16xi32>
    %15 = arith.cmpi sge, %8, %14 : vector<16x16xi32>
    %c8_i32_5 = arith.constant 8 : i32
    %16 = vector.broadcast %c8_i32_5 : i32 to vector<16x16xi32>
    %17 = arith.cmpi slt, %8, %16 : vector<16x16xi32>
    %18 = arith.andi %15, %17 : vector<16x16xi1>
    %19 = arith.andi %13, %18 : vector<16x16xi1>
    %c8_i32_6 = arith.constant 8 : i32
    %20 = vector.broadcast %c8_i32_6 : i32 to vector<16x16xi32>
    %21 = arith.cmpi sge, %7, %20 : vector<16x16xi32>
    %c16_i32 = arith.constant 16 : i32
    %22 = vector.broadcast %c16_i32 : i32 to vector<16x16xi32>
    %23 = arith.cmpi slt, %7, %22 : vector<16x16xi32>
    %24 = arith.andi %21, %23 : vector<16x16xi1>
    %c8_i32_7 = arith.constant 8 : i32
    %25 = vector.broadcast %c8_i32_7 : i32 to vector<16x16xi32>
    %26 = arith.cmpi sge, %8, %25 : vector<16x16xi32>
    %c16_i32_8 = arith.constant 16 : i32
    %27 = vector.broadcast %c16_i32_8 : i32 to vector<16x16xi32>
    %28 = arith.cmpi slt, %8, %27 : vector<16x16xi32>
    %29 = arith.andi %26, %28 : vector<16x16xi1>
    %30 = arith.andi %24, %29 : vector<16x16xi1>
    %31 = arith.ori %19, %30 : vector<16x16xi1>
    %32 = arith.cmpi ne, %7, %8 : vector<16x16xi32>
    %33 = arith.andi %31, %32 : vector<16x16xi1>
    %cst_9 = arith.constant 1.000000e+00 : f32
    %cst_10 = arith.constant 0.000000e+00 : f32
    %34 = vector.broadcast %cst_9 : f32 to vector<16x16xf32>
    %35 = vector.broadcast %cst_10 : f32 to vector<16x16xf32>
    %36 = arith.select %33, %34, %35 : vector<16x16xi1>, vector<16x16xf32>
    %cst_11 = arith.constant dense<0.000000e+00> : vector<16x32xf32>
    %37 = tpu.matmul %36, %6, %cst_11 {dimension_numbers = #tpu.dot_dimension_numbers<[1], [0], [0], [1], [0, 0, 1, 1], [], []>} : vector<16x16xf32>, vector<16x32xf32>, vector<16x32xf32> -> vector<16x32xf32>
    %c24 = arith.constant 24 : index
    %c0_12 = arith.constant 0 : index
    %38 = vector.load %arg1[%c24, %c0_12] : memref<208x128xf32, #tpu.memory_space<vmem>>, vector<32x32xf32>
    %c88 = arith.constant 88 : index
    %c0_13 = arith.constant 0 : index
    %39 = vector.load %arg1[%c88, %c0_13] : memref<208x128xf32, #tpu.memory_space<vmem>>, vector<32x32xf32>
    %c152 = arith.constant 152 : index
    %c0_14 = arith.constant 0 : index
    %40 = vector.load %arg1[%c152, %c0_14] : memref<208x128xf32, #tpu.memory_space<vmem>>, vector<1x32xf32>
    %cst_15 = arith.constant dense<0.000000e+00> : vector<16x32xf32>
    %41 = tpu.matmul %6, %38, %cst_15 {dimension_numbers = #tpu.dot_dimension_numbers<[1], [0], [0], [1], [0, 0, 1, 1], [], []>} : vector<16x32xf32>, vector<32x32xf32>, vector<16x32xf32> -> vector<16x32xf32>
    %42 = arith.addf %6, %41 : vector<16x32xf32>
    %cst_16 = arith.constant dense<0.000000e+00> : vector<16x32xf32>
    %43 = tpu.matmul %37, %39, %cst_16 {dimension_numbers = #tpu.dot_dimension_numbers<[1], [0], [0], [1], [0, 0, 1, 1], [], []>} : vector<16x32xf32>, vector<32x32xf32>, vector<16x32xf32> -> vector<16x32xf32>
    %44 = arith.addf %42, %43 : vector<16x32xf32>
    %45 = vector.broadcast %40 : vector<1x32xf32> to vector<16x32xf32>
    %46 = arith.addf %44, %45 : vector<16x32xf32>
    %47 = math.tanh %46 : vector<16x32xf32>
    %cst_17 = arith.constant dense<0.000000e+00> : vector<16x32xf32>
    %48 = tpu.matmul %36, %47, %cst_17 {dimension_numbers = #tpu.dot_dimension_numbers<[1], [0], [0], [1], [0, 0, 1, 1], [], []>} : vector<16x16xf32>, vector<16x32xf32>, vector<16x32xf32> -> vector<16x32xf32>
    %c56 = arith.constant 56 : index
    %c0_18 = arith.constant 0 : index
    %49 = vector.load %arg1[%c56, %c0_18] : memref<208x128xf32, #tpu.memory_space<vmem>>, vector<32x32xf32>
    %c120 = arith.constant 120 : index
    %c0_19 = arith.constant 0 : index
    %50 = vector.load %arg1[%c120, %c0_19] : memref<208x128xf32, #tpu.memory_space<vmem>>, vector<32x32xf32>
    %c153 = arith.constant 153 : index
    %c0_20 = arith.constant 0 : index
    %51 = vector.load %arg1[%c153, %c0_20] : memref<208x128xf32, #tpu.memory_space<vmem>>, vector<1x32xf32>
    %cst_21 = arith.constant dense<0.000000e+00> : vector<16x32xf32>
    %52 = tpu.matmul %47, %49, %cst_21 {dimension_numbers = #tpu.dot_dimension_numbers<[1], [0], [0], [1], [0, 0, 1, 1], [], []>} : vector<16x32xf32>, vector<32x32xf32>, vector<16x32xf32> -> vector<16x32xf32>
    %53 = arith.addf %6, %52 : vector<16x32xf32>
    %cst_22 = arith.constant dense<0.000000e+00> : vector<16x32xf32>
    %54 = tpu.matmul %48, %50, %cst_22 {dimension_numbers = #tpu.dot_dimension_numbers<[1], [0], [0], [1], [0, 0, 1, 1], [], []>} : vector<16x32xf32>, vector<32x32xf32>, vector<16x32xf32> -> vector<16x32xf32>
    %55 = arith.addf %53, %54 : vector<16x32xf32>
    %56 = vector.broadcast %51 : vector<1x32xf32> to vector<16x32xf32>
    %57 = arith.addf %55, %56 : vector<16x32xf32>
    %58 = math.tanh %57 : vector<16x32xf32>
    %c168 = arith.constant 168 : index
    %c0_23 = arith.constant 0 : index
    %59 = vector.load %arg1[%c168, %c0_23] : memref<208x128xf32, #tpu.memory_space<vmem>>, vector<32x128xf32>
    %c200 = arith.constant 200 : index
    %c0_24 = arith.constant 0 : index
    %60 = vector.load %arg1[%c200, %c0_24] : memref<208x128xf32, #tpu.memory_space<vmem>>, vector<1x128xf32>
    %cst_25 = arith.constant dense<0.000000e+00> : vector<16x128xf32>
    %61 = tpu.matmul %58, %59, %cst_25 {dimension_numbers = #tpu.dot_dimension_numbers<[1], [0], [0], [1], [0, 0, 1, 1], [], []>} : vector<16x32xf32>, vector<32x128xf32>, vector<16x128xf32> -> vector<16x128xf32>
    %62 = vector.broadcast %60 : vector<1x128xf32> to vector<16x128xf32>
    %63 = arith.addf %61, %62 : vector<16x128xf32>
    %cst_26 = arith.constant dense<0xFF800000> : vector<16xf32>
    %64 = vector.multi_reduction <maximumf>, %63, %cst_26 [1] : vector<16x128xf32> to vector<16xf32>
    %65 = vector.shape_cast %64 : vector<16xf32> to vector<16x1xf32>
    %66 = vector.broadcast %65 : vector<16x1xf32> to vector<16x128xf32>
    %67 = arith.subf %63, %66 : vector<16x128xf32>
    %68 = math.exp %67 : vector<16x128xf32>
    %cst_27 = arith.constant dense<0.000000e+00> : vector<16xf32>
    %69 = vector.multi_reduction <add>, %68, %cst_27 [1] : vector<16x128xf32> to vector<16xf32>
    %70 = vector.shape_cast %69 : vector<16xf32> to vector<16x1xf32>
    %71 = math.log %70 : vector<16x1xf32>
    %72 = arith.addf %65, %71 : vector<16x1xf32>
    %73 = vector.broadcast %72 : vector<16x1xf32> to vector<16x128xf32>
    %74 = arith.subf %63, %73 : vector<16x128xf32>
    %c160 = arith.constant 160 : index
    %c0_28 = arith.constant 0 : index
    %75 = vector.load %arg1[%c160, %c0_28] : memref<208x128xf32, #tpu.memory_space<vmem>>, vector<3x32xf32>
    %76 = vector.extract_strided_slice %75 {offsets = [0, 0], sizes = [1, 32], strides = [1, 1]} : vector<3x32xf32> to vector<1x32xf32>
    %77 = vector.broadcast %76 : vector<1x32xf32> to vector<16x32xf32>
    %78 = arith.mulf %58, %77 : vector<16x32xf32>
    %cst_29 = arith.constant dense<0.000000e+00> : vector<16xf32>
    %79 = vector.multi_reduction <add>, %78, %cst_29 [1] : vector<16x32xf32> to vector<16xf32>
    %80 = vector.shape_cast %79 : vector<16xf32> to vector<16x1xf32>
    %81 = vector.extract_strided_slice %75 {offsets = [1, 0], sizes = [1, 32], strides = [1, 1]} : vector<3x32xf32> to vector<1x32xf32>
    %82 = vector.broadcast %81 : vector<1x32xf32> to vector<16x32xf32>
    %83 = arith.mulf %48, %82 : vector<16x32xf32>
    %cst_30 = arith.constant dense<0.000000e+00> : vector<16xf32>
    %84 = vector.multi_reduction <add>, %83, %cst_30 [1] : vector<16x32xf32> to vector<16xf32>
    %85 = vector.shape_cast %84 : vector<16xf32> to vector<16x1xf32>
    %86 = arith.addf %80, %85 : vector<16x1xf32>
    %87 = vector.extract_strided_slice %75 {offsets = [2, 0], sizes = [1, 1], strides = [1, 1]} : vector<3x32xf32> to vector<1x1xf32>
    %88 = vector.broadcast %87 : vector<1x1xf32> to vector<16x1xf32>
    %89 = arith.addf %86, %88 : vector<16x1xf32>
    %cst_31 = arith.constant 0.000000e+00 : f32
    %90 = vector.broadcast %cst_31 : f32 to vector<16x89xf32>
    %91 = vector.extract_strided_slice %74 {offsets = [0, 0], sizes = [16, 6], strides = [1, 1]} : vector<16x128xf32> to vector<16x6xf32>
    %92 = tpu.concatenate %91, %89, %48, %90 in 1 : vector<16x6xf32>, vector<16x1xf32>, vector<16x32xf32>, vector<16x89xf32> -> vector<16x128xf32>
    %c0_32 = arith.constant 0 : index
    %c0_33 = arith.constant 0 : index
    %93 = vector.load %arg2[%c0_32, %c0_33] : memref<16x128xf32, #tpu.memory_space<vmem>>, vector<16x128xf32>
    tpu.vector_store %arg2[%c0_32, %c0_33], %92 {strides = array<i32>} : memref<16x128xf32, #tpu.memory_space<vmem>>, vector<16x128xf32>,
    return
  }
}

</mosaic_0001>

<llo_original>
// kernel: commnet_forward.1
$region0: #{commnet_forward.1}
  #allocation0 [shape = 'u32[]', space=smem, size = 0x4, offset = 0x4, fixed_abs, tag = 'smem constant byte address 0x4 - core index']
  #allocation1 [shape = 'u32[144,128]{1,0:T(1,128)}', space=vmem, size = 0x12000, scoped, tag = 'internal scratch']
  %s0 = inlined_call_operand.hbm [shape: f32[16,16], index: 0, kind: input, shape index: {}]
  %s1 = inlined_call_operand.hbm [shape: f32[208,128], index: 1, kind: input, shape index: {}]
  %s2 = inlined_call_operand.vmem [shape: f32[16,128], index: 2, kind: output, shape index: {}]
  %s3 = sld [smem:[#allocation0]]
  $region26: #{commnet_forward.1} parent=0
    _
  %s5 = ssub.s32 1, %s3
  %s6 = scalar_select 0, %s5, %s3
  $region1: #{commnet_forward.1} parent=0
    #allocation2 [shape = 'u8[8192]{0}', space=vmem, size = 0x2000, scoped, tag = 'input window, operand 0, single buffered']
    #allocation3 [shape = 's32[1]{0}', space=sflag, size = 0x4, scoped, tag = 'scoped memory for commnet_forward.1']
    #allocation4 [shape = 'u8[106496]{0}', space=vmem, size = 0x1a000, scoped, tag = 'input window, operand 1, single buffered']
    #allocation5 [shape = 's32[1]{0}', space=sflag, size = 0x4, scoped, tag = 'scoped memory for commnet_forward.1']
    %7 = vsyncpa [#allocation3], 0
    %8 = vsyncpa [#allocation5], 0
    // Predicated region
    $region2: #{commnet_forward.1} parent=1 // pred_check
      _
    $region3: #{commnet_forward.1} parent=1 // pred_check_branch
      %10 = sbr.rel (0) target = $region5
    $region4: #{commnet_forward.1} parent=1 // pred_region
      %s12 = ssub.s32 256, 256
      %13 = vsyncadd [#allocation3], %s12
      %s14 = sshll.u32 [#allocation2], 4
      %s15 = int_to_ptr.vmem [resolvable:$true] %s14
      %20 = dma.hbm_to_vmem [thread:$0]  %s0, 256, %s15, [#allocation3], 128, 128, 8
    $region5: #{commnet_forward.1} parent=1 // pred_fallthru
      _
    // Predicated region
    $region6: #{commnet_forward.1} parent=1 // pred_check
      _
    $region7: #{commnet_forward.1} parent=1 // pred_check_branch
      %22 = sbr.rel (0) target = $region9
    $region8: #{commnet_forward.1} parent=1 // pred_region
      %s24 = ssub.s32 3328, 3328
      %25 = vsyncadd [#allocation5], %s24
      %s26 = sshll.u32 [#allocation4], 4
      %s27 = int_to_ptr.vmem [resolvable:$true] %s26
      %32 = dma.hbm_to_vmem [thread:$0]  %s1, 3328, %s27, [#allocation5], 128, 128, 8
    $region9: #{commnet_forward.1} parent=1 // pred_fallthru
      _
    // Predicated region
    $region10: #{commnet_forward.1} parent=1 // pred_check
      _
    $region11: #{commnet_forward.1} parent=1 // pred_check_branch
      %34 = sbr.rel (0) target = $region13
    $region12: #{commnet_forward.1} parent=1 // pred_region
      %35 = dma.done [#allocation3], 256
    $region13: #{commnet_forward.1} parent=1 // pred_fallthru
      _
    // Predicated region
    $region14: #{commnet_forward.1} parent=1 // pred_check
      _
    $region15: #{commnet_forward.1} parent=1 // pred_check_branch
      %37 = sbr.rel (0) target = $region17
    $region16: #{commnet_forward.1} parent=1 // pred_region
      %38 = dma.done [#allocation5], 3328
    $region17: #{commnet_forward.1} parent=1 // pred_fallthru
      _
    %v39 = vld [vmem:[#allocation4] sm:$0xff]
    %v40 = vld [vmem:[#allocation4 + $0x8] sm:$0xff]
    %v41 = vld [vmem:[#allocation4 + $0x10] sm:$0x1]
    %v42 = vld [vmem:[#allocation2] sm:$0xff]
    %v43 = vld [vmem:[#allocation2 + $0x8] sm:$0xff]
    %v44 = vlaneseq
    %v45 = vshrl.u32 %v44, 7
    %v46 = vsub.s32 0, %v45
    %v47 = vrot.slane %v41, %v46
    %vm48 = vcmask 130048
    %v50 = vsel %vm48, %v42, 0
    %v53 = vsel %vm48, %v43, 0
    %55 = vmatprep.subr.mxu0 0.0
    %56 = vmatpush1.msra.mxu0 %v39
    %57 = vmatprep.subr.mxu0 0.0
    %58 = vmatpush1.msra.mxu0 %v40
    %59 = vmatprep.subr.mxu0 0.0
    %60 = vmatpush1.msra.mxu0 0.0
    %61 = vmatprep.subr.mxu0 0.0
    %62 = vmatpush1.msra.mxu0 0.0
    %63 = vmatprep.subr.mxu0 0.0
    %64 = vmatpush1.msra.mxu0 0.0
    %65 = vmatprep.subr.mxu0 0.0
    %66 = vmatpush1.msra.mxu0 0.0
    %67 = vmatprep.subr.mxu0 0.0
    %68 = vmatpush1.msra.mxu0 0.0
    %69 = vmatprep.subr.mxu0 0.0
    %70 = vmatpush1.msra.mxu0 0.0
    %71 = vmatprep.subr.mxu0 0.0
    %72 = vmatpush1.msra.mxu0 0.0
    %73 = vmatprep.subr.mxu0 0.0
    %74 = vmatpush1.msra.mxu0 0.0
    %75 = vmatprep.subr.mxu0 0.0
    %76 = vmatpush1.msra.mxu0 0.0
    %77 = vmatprep.subr.mxu0 0.0
    %78 = vmatpush1.msra.mxu0 0.0
    %79 = vmatprep.subr.mxu0 0.0
    %80 = vmatpush1.msra.mxu0 0.0
    %81 = vmatprep.subr.mxu0 0.0
    %82 = vmatpush1.msra.mxu0 0.0
    %83 = vmatprep.subr.mxu0 0.0
    %84 = vmatpush1.msra.mxu0 0.0
    %85 = vmatprep.subr.mxu0 0.0
    %86 = vmatpush1.msra.mxu0 0.0
    %87 = vmatprep.subr.mxu0 0.0
    %88 = vmatpush1.msra.mxu0 0.0
    %89 = vmatprep.subr.mxu0 0.0
    %90 = vmatpush1.msra.mxu0 0.0
    %91 = vmatprep.subr.mxu0 0.0
    %92 = vmatpush1.msra.mxu0 0.0
    %93 = vmatprep.subr.mxu0 0.0
    %94 = vmatpush1.msra.mxu0 0.0
    %95 = vmatprep.subr.mxu0 0.0
    %96 = vmatpush1.msra.mxu0 0.0
    %97 = vmatprep.subr.mxu0 0.0
    %98 = vmatpush1.msra.mxu0 0.0
    %99 = vmatprep.subr.mxu0 0.0
    %100 = vmatpush1.msra.mxu0 0.0
    %101 = vmatprep.subr.mxu0 0.0
    %102 = vmatpush1.msra.mxu0 0.0
    %103 = vmatprep.subr.mxu0 0.0
    %104 = vmatpush1.msra.mxu0 0.0
    %105 = vmatprep.subr.mxu0 0.0
    %106 = vmatpush1.msra.mxu0 0.0
    %107 = vmatprep.subr.mxu0 0.0
    %108 = vmatpush1.msra.mxu0 0.0
    %109 = vmatprep.subr.mxu0 0.0
    %110 = vmatpush1.msra.mxu0 0.0
    %111 = vmatprep.subr.mxu0 0.0
    %112 = vmatpush1.msra.mxu0 0.0
    %113 = vmatprep.subr.mxu0 0.0
    %114 = vmatpush1.msra.mxu0 0.0
    %115 = vmatprep.subr.mxu0 0.0
    %116 = vmatpush1.msra.mxu0 0.0
    %117 = vmatprep.subr.mxu0 0.0
    %118 = vmatpush1.msra.mxu0 0.0
    %119 = vmatprep.mubr.f32.mxu0 0.0
    %120 = vmatmul.mubr.f32.gmra.mrb[0].mxu0 %v50
    %v121 = vpop.f32.mrb[0].mxu0
    %v122 = vadd.f32 %v47, %v121
    %v123 = vpop.f32.mrb[0].mxu0
    %124 = vmatprep.mubr.f32.mxu0 0.0
    %125 = vmatmul.mubr.f32.gmra.mrb[0].mxu0 %v53
    %v126 = vpop.f32.mrb[0].mxu0
    %v127 = vadd.f32 %v47, %v126
    %v128 = vpop.f32.mrb[0].mxu0
    %129 = vdwg.mxu0
    %v130 = vtanh.pop %v122
    %v131 = vtanh.pop %v127
    %v132 = vlaneseq
    %v133 = vshrl.u32 %v132, 7
    %v134 = vadd.s32 %v133, 8
    %v135 = vlaneseq
    %v136 = vand.u32 %v135, 127
    %vm137 = vcmp.ge.s32.totalorder %v133, 0
    %vm138 = vcmp.ge.s32.totalorder %v134, 0
    %vm139 = vcmp.lt.s32.totalorder %v133, 8
    %vm140 = vcmp.lt.s32.totalorder %v134, 8
    %vm141 = vmand %vm137, %vm139
    %vm142 = vmand %vm138, %vm140
    %vm143 = vcmp.ge.s32.totalorder %v136, 0
    %vm144 = vcmp.lt.s32.totalorder %v136, 8
    %vm145 = vmand %vm143, %vm144
    %vm146 = vmand %vm141, %vm145
    %vm147 = vmand %vm142, %vm145
    %vm148 = vcmp.ge.s32.totalorder %v133, 8
    %vm149 = vcmp.ge.s32.totalorder %v134, 8
    %vm150 = vcmp.lt.s32.totalorder %v133, 16
    %vm151 = vcmp.lt.s32.totalorder %v134, 16
    %vm152 = vmand %vm148, %vm150
    %vm153 = vmand %vm149, %vm151
    %vm154 = vcmp.ge.s32.totalorder %v136, 8
    %vm155 = vcmp.lt.s32.totalorder %v136, 16
    %vm156 = vmand %vm154, %vm155
    %vm157 = vmand %vm152, %vm156
    %vm158 = vmand %vm153, %vm156
    %vm159 = vmor %vm146, %vm157
    %vm160 = vmor %vm147, %vm158
    %vm161 = vcmp.ne.s32.totalorder %v133, %v136
    %vm162 = vcmp.ne.s32.totalorder %v134, %v136
    %vm163 = vmand %vm159, %vm161
    %vm164 = vmand %vm160, %vm162
    %v165 = vsel %vm163, 1.0, 0.0
    %v166 = vsel %vm164, 1.0, 0.0
    %v168 = vsel %vm48, %v165, 0
    %v171 = vsel %vm48, %v166, 0
    %173 = vmatprep.subr.mxu0 0.0
    %174 = vmatpush1.msra.mxu0 %v130
    %175 = vmatprep.subr.mxu0 0.0
    %176 = vmatpush1.msra.mxu0 %v131
    %177 = vmatprep.subr.mxu0 0.0
    %178 = vmatpush1.msra.mxu0 0.0
    %179 = vmatprep.subr.mxu0 0.0
    %180 = vmatpush1.msra.mxu0 0.0
    %181 = vmatprep.subr.mxu0 0.0
    %182 = vmatpush1.msra.mxu0 0.0
    %183 = vmatprep.subr.mxu0 0.0
    %184 = vmatpush1.msra.mxu0 0.0
    %185 = vmatprep.subr.mxu0 0.0
    %186 = vmatpush1.msra.mxu0 0.0
    %187 = vmatprep.subr.mxu0 0.0
    %188 = vmatpush1.msra.mxu0 0.0
    %189 = vmatprep.subr.mxu0 0.0
    %190 = vmatpush1.msra.mxu0 0.0
    %191 = vmatprep.subr.mxu0 0.0
    %192 = vmatpush1.msra.mxu0 0.0
    %193 = vmatprep.subr.mxu0 0.0
    %194 = vmatpush1.msra.mxu0 0.0
    %195 = vmatprep.subr.mxu0 0.0
    %196 = vmatpush1.msra.mxu0 0.0
    %197 = vmatprep.subr.mxu0 0.0
    %198 = vmatpush1.msra.mxu0 0.0
    %199 = vmatprep.subr.mxu0 0.0
    %200 = vmatpush1.msra.mxu0 0.0
    %201 = vmatprep.subr.mxu0 0.0
    %202 = vmatpush1.msra.mxu0 0.0
    %203 = vmatprep.subr.mxu0 0.0
    %204 = vmatpush1.msra.mxu0 0.0
    %205 = vmatprep.subr.mxu0 0.0
    %206 = vmatpush1.msra.mxu0 0.0
    %207 = vmatprep.subr.mxu0 0.0
    %208 = vmatpush1.msra.mxu0 0.0
    %209 = vmatprep.subr.mxu0 0.0
    %210 = vmatpush1.msra.mxu0 0.0
    %211 = vmatprep.subr.mxu0 0.0
    %212 = vmatpush1.msra.mxu0 0.0
    %213 = vmatprep.subr.mxu0 0.0
    %214 = vmatpush1.msra.mxu0 0.0
    %215 = vmatprep.subr.mxu0 0.0
    %216 = vmatpush1.msra.mxu0 0.0
    %217 = vmatprep.subr.mxu0 0.0
    %218 = vmatpush1.msra.mxu0 0.0
    %219 = vmatprep.subr.mxu0 0.0
    %220 = vmatpush1.msra.mxu0 0.0
    %221 = vmatprep.subr.mxu0 0.0
    %222 = vmatpush1.msra.mxu0 0.0
    %223 = vmatprep.subr.mxu0 0.0
    %224 = vmatpush1.msra.mxu0 0.0
    %225 = vmatprep.subr.mxu0 0.0
    %226 = vmatpush1.msra.mxu0 0.0
    %227 = vmatprep.subr.mxu0 0.0
    %228 = vmatpush1.msra.mxu0 0.0
    %229 = vmatprep.subr.mxu0 0.0
    %230 = vmatpush1.msra.mxu0 0.0
    %231 = vmatprep.subr.mxu0 0.0
    %232 = vmatpush1.msra.mxu0 0.0
    %233 = vmatprep.subr.mxu0 0.0
    %234 = vmatpush1.msra.mxu0 0.0
    %235 = vmatprep.subr.mxu0 0.0
    %236 = vmatpush1.msra.mxu0 0.0
    %237 = vmatprep.mubr.f32.mxu0 0.0
    %238 = vmatmul.mubr.f32.gmra.mrb[0].mxu0 %v168
    %v239 = vpop.f32.mrb[0].mxu0
    %v240 = vadd.f32 0.0, %v239
    %v241 = vpop.f32.mrb[0].mxu0
    %242 = vmatprep.mubr.f32.mxu0 0.0
    %243 = vmatmul.mubr.f32.gmra.mrb[0].mxu0 %v171
    %v244 = vpop.f32.mrb[0].mxu0
    %v245 = vadd.f32 0.0, %v244
    %v246 = vpop.f32.mrb[0].mxu0
    %247 = vdwg.mxu0
    %v248 = vld [vmem:[#allocation4 + $0x18] sm:$0xff]
    %v249 = vld [vmem:[#allocation4 + $0x20] sm:$0xff]
    %v250 = vld [vmem:[#allocation4 + $0x28] sm:$0xff]
    %v251 = vld [vmem:[#allocation4 + $0x30] sm:$0xff]
    %v252 = vld [vmem:[#allocation4 + $0x58] sm:$0xff]
    %v253 = vld [vmem:[#allocation4 + $0x60] sm:$0xff]
    %v254 = vld [vmem:[#allocation4 + $0x68] sm:$0xff]
    %v255 = vld [vmem:[#allocation4 + $0x70] sm:$0xff]
    %v256 = vld [vmem:[#allocation4 + $0x98] sm:$0x1]
    %vm257 = vcmask 261120
    %v259 = vsel %vm257, %v130, 0
    %v262 = vsel %vm257, %v131, 0
    %264 = vmatprep.subr.mxu0 0.0
    %265 = vmatpush1.msra.mxu0 %v248
    %266 = vmatprep.subr.mxu0 0.0
    %267 = vmatpush1.msra.mxu0 %v249
    %268 = vmatprep.subr.mxu0 0.0
    %269 = vmatpush1.msra.mxu0 %v250
    %270 = vmatprep.subr.mxu0 0.0
    %271 = vmatpush1.msra.mxu0 %v251
    %272 = vmatprep.subr.mxu0 0.0
    %273 = vmatpush1.msra.mxu0 0.0
    %274 = vmatprep.subr.mxu0 0.0
    %275 = vmatpush1.msra.mxu0 0.0
    %276 = vmatprep.subr.mxu0 0.0
    %277 = vmatpush1.msra.mxu0 0.0
    %278 = vmatprep.subr.mxu0 0.0
    %279 = vmatpush1.msra.mxu0 0.0
    %280 = vmatprep.subr.mxu0 0.0
    %281 = vmatpush1.msra.mxu0 0.0
    %282 = vmatprep.subr.mxu0 0.0
    %283 = vmatpush1.msra.mxu0 0.0
    %284 = vmatprep.subr.mxu0 0.0
    %285 = vmatpush1.msra.mxu0 0.0
    %286 = vmatprep.subr.mxu0 0.0
    %287 = vmatpush1.msra.mxu0 0.0
    %288 = vmatprep.subr.mxu0 0.0
    %289 = vmatpush1.msra.mxu0 0.0
    %290 = vmatprep.subr.mxu0 0.0
    %291 = vmatpush1.msra.mxu0 0.0
    %292 = vmatprep.subr.mxu0 0.0
    %293 = vmatpush1.msra.mxu0 0.0
    %294 = vmatprep.subr.mxu0 0.0
    %295 = vmatpush1.msra.mxu0 0.0
    %296 = vmatprep.subr.mxu0 0.0
    %297 = vmatpush1.msra.mxu0 0.0
    %298 = vmatprep.subr.mxu0 0.0
    %299 = vmatpush1.msra.mxu0 0.0
    %300 = vmatprep.subr.mxu0 0.0
    %301 = vmatpush1.msra.mxu0 0.0
    %302 = vmatprep.subr.mxu0 0.0
    %303 = vmatpush1.msra.mxu0 0.0
    %304 = vmatprep.subr.mxu0 0.0
    %305 = vmatpush1.msra.mxu0 0.0
    %306 = vmatprep.subr.mxu0 0.0
    %307 = vmatpush1.msra.mxu0 0.0
    %308 = vmatprep.subr.mxu0 0.0
    %309 = vmatpush1.msra.mxu0 0.0
    %310 = vmatprep.subr.mxu0 0.0
    %311 = vmatpush1.msra.mxu0 0.0
    %312 = vmatprep.subr.mxu0 0.0
    %313 = vmatpush1.msra.mxu0 0.0
    %314 = vmatprep.subr.mxu0 0.0
    %315 = vmatpush1.msra.mxu0 0.0
    %316 = vmatprep.subr.mxu0 0.0
    %317 = vmatpush1.msra.mxu0 0.0
    %318 = vmatprep.subr.mxu0 0.0
    %319 = vmatpush1.msra.mxu0 0.0
    %320 = vmatprep.subr.mxu0 0.0
    %321 = vmatpush1.msra.mxu0 0.0
    %322 = vmatprep.subr.mxu0 0.0
    %323 = vmatpush1.msra.mxu0 0.0
    %324 = vmatprep.subr.mxu0 0.0
    %325 = vmatpush1.msra.mxu0 0.0
    %326 = vmatprep.subr.mxu0 0.0
    %327 = vmatpush1.msra.mxu0 0.0
    %328 = vmatprep.mubr.f32.mxu0 0.0
    %329 = vmatmul.mubr.f32.gmra.mrb[0].mxu0 %v259
    %v330 = vpop.f32.mrb[0].mxu0
    %v331 = vadd.f32 0.0, %v330
    %v332 = vpop.f32.mrb[0].mxu0
    %333 = vmatprep.mubr.f32.mxu0 0.0
    %334 = vmatmul.mubr.f32.gmra.mrb[0].mxu0 %v262
    %v335 = vpop.f32.mrb[0].mxu0
    %v336 = vadd.f32 0.0, %v335
    %v337 = vpop.f32.mrb[0].mxu0
    %338 = vdwg.mxu0
    %v339 = vadd.f32 %v130, %v331
    %v340 = vadd.f32 %v131, %v336
    %v342 = vsel %vm257, %v240, 0
    %v345 = vsel %vm257, %v245, 0
    %347 = vmatprep.subr.mxu0 0.0
    %348 = vmatpush1.msra.mxu0 %v252
    %349 = vmatprep.subr.mxu0 0.0
    %350 = vmatpush1.msra.mxu0 %v253
    %351 = vmatprep.subr.mxu0 0.0
    %352 = vmatpush1.msra.mxu0 %v254
    %353 = vmatprep.subr.mxu0 0.0
    %354 = vmatpush1.msra.mxu0 %v255
    %355 = vmatprep.subr.mxu0 0.0
    %356 = vmatpush1.msra.mxu0 0.0
    %357 = vmatprep.subr.mxu0 0.0
    %358 = vmatpush1.msra.mxu0 0.0
    %359 = vmatprep.subr.mxu0 0.0
    %360 = vmatpush1.msra.mxu0 0.0
    %361 = vmatprep.subr.mxu0 0.0
    %362 = vmatpush1.msra.mxu0 0.0
    %363 = vmatprep.subr.mxu0 0.0
    %364 = vmatpush1.msra.mxu0 0.0
    %365 = vmatprep.subr.mxu0 0.0
    %366 = vmatpush1.msra.mxu0 0.0
    %367 = vmatprep.subr.mxu0 0.0
    %368 = vmatpush1.msra.mxu0 0.0
    %369 = vmatprep.subr.mxu0 0.0
    %370 = vmatpush1.msra.mxu0 0.0
    %371 = vmatprep.subr.mxu0 0.0
    %372 = vmatpush1.msra.mxu0 0.0
    %373 = vmatprep.subr.mxu0 0.0
    %374 = vmatpush1.msra.mxu0 0.0
    %375 = vmatprep.subr.mxu0 0.0
    %376 = vmatpush1.msra.mxu0 0.0
    %377 = vmatprep.subr.mxu0 0.0
    %378 = vmatpush1.msra.mxu0 0.0
    %379 = vmatprep.subr.mxu0 0.0
    %380 = vmatpush1.msra.mxu0 0.0
    %381 = vmatprep.subr.mxu0 0.0
    %382 = vmatpush1.msra.mxu0 0.0
    %383 = vmatprep.subr.mxu0 0.0
    %384 = vmatpush1.msra.mxu0 0.0
    %385 = vmatprep.subr.mxu0 0.0
    %386 = vmatpush1.msra.mxu0 0.0
    %387 = vmatprep.subr.mxu0 0.0
    %388 = vmatpush1.msra.mxu0 0.0
    %389 = vmatprep.subr.mxu0 0.0
    %390 = vmatpush1.msra.mxu0 0.0
    %391 = vmatprep.subr.mxu0 0.0
    %392 = vmatpush1.msra.mxu0 0.0
    %393 = vmatprep.subr.mxu0 0.0
    %394 = vmatpush1.msra.mxu0 0.0
    %395 = vmatprep.subr.mxu0 0.0
    %396 = vmatpush1.msra.mxu0 0.0
    %397 = vmatprep.subr.mxu0 0.0
    %398 = vmatpush1.msra.mxu0 0.0
    %399 = vmatprep.subr.mxu0 0.0
    %400 = vmatpush1.msra.mxu0 0.0
    %401 = vmatprep.subr.mxu0 0.0
    %402 = vmatpush1.msra.mxu0 0.0
    %403 = vmatprep.subr.mxu0 0.0
    %404 = vmatpush1.msra.mxu0 0.0
    %405 = vmatprep.subr.mxu0 0.0
    %406 = vmatpush1.msra.mxu0 0.0
    %407 = vmatprep.subr.mxu0 0.0
    %408 = vmatpush1.msra.mxu0 0.0
    %409 = vmatprep.subr.mxu0 0.0
    %410 = vmatpush1.msra.mxu0 0.0
    %411 = vmatprep.mubr.f32.mxu0 0.0
    %412 = vmatmul.mubr.f32.gmra.mrb[0].mxu0 %v342
    %v413 = vpop.f32.mrb[0].mxu0
    %v414 = vadd.f32 0.0, %v413
    %v415 = vpop.f32.mrb[0].mxu0
    %416 = vmatprep.mubr.f32.mxu0 0.0
    %417 = vmatmul.mubr.f32.gmra.mrb[0].mxu0 %v345
    %v418 = vpop.f32.mrb[0].mxu0
    %v419 = vadd.f32 0.0, %v418
    %v420 = vpop.f32.mrb[0].mxu0
    %421 = vdwg.mxu0
    %v422 = vadd.f32 %v339, %v414
    %v423 = vadd.f32 %v340, %v419
    %v424 = vlaneseq
    %v425 = vshrl.u32 %v424, 7
    %v426 = vsub.s32 0, %v425
    %v427 = vrot.slane %v256, %v426
    %v428 = vadd.f32 %v422, %v427
    %v429 = vadd.f32 %v423, %v427
    %v430 = vtanh.pop %v428
    %v431 = vtanh.pop %v429
    %432 = vmatprep.subr.mxu0 0.0
    %433 = vmatpush1.msra.mxu0 %v430
    %434 = vmatprep.subr.mxu0 0.0
    %435 = vmatpush1.msra.mxu0 %v431
    %436 = vmatprep.subr.mxu0 0.0
    %437 = vmatpush1.msra.mxu0 0.0
    %438 = vmatprep.subr.mxu0 0.0
    %439 = vmatpush1.msra.mxu0 0.0
    %440 = vmatprep.subr.mxu0 0.0
    %441 = vmatpush1.msra.mxu0 0.0
    %442 = vmatprep.subr.mxu0 0.0
    %443 = vmatpush1.msra.mxu0 0.0
    %444 = vmatprep.subr.mxu0 0.0
    %445 = vmatpush1.msra.mxu0 0.0
    %446 = vmatprep.subr.mxu0 0.0
    %447 = vmatpush1.msra.mxu0 0.0
    %448 = vmatprep.subr.mxu0 0.0
    %449 = vmatpush1.msra.mxu0 0.0
    %450 = vmatprep.subr.mxu0 0.0
    %451 = vmatpush1.msra.mxu0 0.0
    %452 = vmatprep.subr.mxu0 0.0
    %453 = vmatpush1.msra.mxu0 0.0
    %454 = vmatprep.subr.mxu0 0.0
    %455 = vmatpush1.msra.mxu0 0.0
    %456 = vmatprep.subr.mxu0 0.0
    %457 = vmatpush1.msra.mxu0 0.0
    %458 = vmatprep.subr.mxu0 0.0
    %459 = vmatpush1.msra.mxu0 0.0
    %460 = vmatprep.subr.mxu0 0.0
    %461 = vmatpush1.msra.mxu0 0.0
    %462 = vmatprep.subr.mxu0 0.0
    %463 = vmatpush1.msra.mxu0 0.0
    %464 = vmatprep.subr.mxu0 0.0
    %465 = vmatpush1.msra.mxu0 0.0
    %466 = vmatprep.subr.mxu0 0.0
    %467 = vmatpush1.msra.mxu0 0.0
    %468 = vmatprep.subr.mxu0 0.0
    %469 = vmatpush1.msra.mxu0 0.0
    %470 = vmatprep.subr.mxu0 0.0
    %471 = vmatpush1.msra.mxu0 0.0
    %472 = vmatprep.subr.mxu0 0.0
    %473 = vmatpush1.msra.mxu0 0.0
    %474 = vmatprep.subr.mxu0 0.0
    %475 = vmatpush1.msra.mxu0 0.0
    %476 = vmatprep.subr.mxu0 0.0
    %477 = vmatpush1.msra.mxu0 0.0
    %478 = vmatprep.subr.mxu0 0.0
    %479 = vmatpush1.msra.mxu0 0.0
    %480 = vmatprep.subr.mxu0 0.0
    %481 = vmatpush1.msra.mxu0 0.0
    %482 = vmatprep.subr.mxu0 0.0
    %483 = vmatpush1.msra.mxu0 0.0
    %484 = vmatprep.subr.mxu0 0.0
    %485 = vmatpush1.msra.mxu0 0.0
    %486 = vmatprep.subr.mxu0 0.0
    %487 = vmatpush1.msra.mxu0 0.0
    %488 = vmatprep.subr.mxu0 0.0
    %489 = vmatpush1.msra.mxu0 0.0
    %490 = vmatprep.subr.mxu0 0.0
    %491 = vmatpush1.msra.mxu0 0.0
    %492 = vmatprep.subr.mxu0 0.0
    %493 = vmatpush1.msra.mxu0 0.0
    %494 = vmatprep.subr.mxu0 0.0
    %495 = vmatpush1.msra.mxu0 0.0
    %496 = vmatprep.mubr.f32.mxu0 0.0
    %497 = vmatmul.mubr.f32.gmra.mrb[0].mxu0 %v168
    %v498 = vpop.f32.mrb[0].mxu0
    %v499 = vadd.f32 0.0, %v498
    %v500 = vpop.f32.mrb[0].mxu0
    %501 = vmatprep.mubr.f32.mxu0 0.0
    %502 = vmatmul.mubr.f32.gmra.mrb[0].mxu0 %v171
    %v503 = vpop.f32.mrb[0].mxu0
    %v504 = vadd.f32 0.0, %v503
    %v505 = vpop.f32.mrb[0].mxu0
    %506 = vdwg.mxu0
    %v507 = vld [vmem:[#allocation4 + $0x38] sm:$0xff]
    %v508 = vld [vmem:[#allocation4 + $0x40] sm:$0xff]
    %v509 = vld [vmem:[#allocation4 + $0x48] sm:$0xff]
    %v510 = vld [vmem:[#allocation4 + $0x50] sm:$0xff]
    %v511 = vld [vmem:[#allocation4 + $0x78] sm:$0xff]
    %v512 = vld [vmem:[#allocation4 + $0x80] sm:$0xff]
    %v513 = vld [vmem:[#allocation4 + $0x88] sm:$0xff]
    %v514 = vld [vmem:[#allocation4 + $0x90] sm:$0xff]
    %v515 = vld [vmem:[#allocation4 + $0x99] sm:$0x1]
    %v517 = vsel %vm257, %v430, 0
    %v520 = vsel %vm257, %v431, 0
    %522 = vmatprep.subr.mxu0 0.0
    %523 = vmatpush1.msra.mxu0 %v507
    %524 = vmatprep.subr.mxu0 0.0
    %525 = vmatpush1.msra.mxu0 %v508
    %526 = vmatprep.subr.mxu0 0.0
    %527 = vmatpush1.msra.mxu0 %v509
    %528 = vmatprep.subr.mxu0 0.0
    %529 = vmatpush1.msra.mxu0 %v510
    %530 = vmatprep.subr.mxu0 0.0
    %531 = vmatpush1.msra.mxu0 0.0
    %532 = vmatprep.subr.mxu0 0.0
    %533 = vmatpush1.msra.mxu0 0.0
    %534 = vmatprep.subr.mxu0 0.0
    %535 = vmatpush1.msra.mxu0 0.0
    %536 = vmatprep.subr.mxu0 0.0
    %537 = vmatpush1.msra.mxu0 0.0
    %538 = vmatprep.subr.mxu0 0.0
    %539 = vmatpush1.msra.mxu0 0.0
    %540 = vmatprep.subr.mxu0 0.0
    %541 = vmatpush1.msra.mxu0 0.0
    %542 = vmatprep.subr.mxu0 0.0
    %543 = vmatpush1.msra.mxu0 0.0
    %544 = vmatprep.subr.mxu0 0.0
    %545 = vmatpush1.msra.mxu0 0.0
    %546 = vmatprep.subr.mxu0 0.0
    %547 = vmatpush1.msra.mxu0 0.0
    %548 = vmatprep.subr.mxu0 0.0
    %549 = vmatpush1.msra.mxu0 0.0
    %550 = vmatprep.subr.mxu0 0.0
    %551 = vmatpush1.msra.mxu0 0.0
    %552 = vmatprep.subr.mxu0 0.0
    %553 = vmatpush1.msra.mxu0 0.0
    %554 = vmatprep.subr.mxu0 0.0
    %555 = vmatpush1.msra.mxu0 0.0
    %556 = vmatprep.subr.mxu0 0.0
    %557 = vmatpush1.msra.mxu0 0.0
    %558 = vmatprep.subr.mxu0 0.0
    %559 = vmatpush1.msra.mxu0 0.0
    %560 = vmatprep.subr.mxu0 0.0
    %561 = vmatpush1.msra.mxu0 0.0
    %562 = vmatprep.subr.mxu0 0.0
    %563 = vmatpush1.msra.mxu0 0.0
    %564 = vmatprep.subr.mxu0 0.0
    %565 = vmatpush1.msra.mxu0 0.0
    %566 = vmatprep.subr.mxu0 0.0
    %567 = vmatpush1.msra.mxu0 0.0
    %568 = vmatprep.subr.mxu0 0.0
    %569 = vmatpush1.msra.mxu0 0.0
    %570 = vmatprep.subr.mxu0 0.0
    %571 = vmatpush1.msra.mxu0 0.0
    %572 = vmatprep.subr.mxu0 0.0
    %573 = vmatpush1.msra.mxu0 0.0
    %574 = vmatprep.subr.mxu0 0.0
    %575 = vmatpush1.msra.mxu0 0.0
    %576 = vmatprep.subr.mxu0 0.0
    %577 = vmatpush1.msra.mxu0 0.0
    %578 = vmatprep.subr.mxu0 0.0
    %579 = vmatpush1.msra.mxu0 0.0
    %580 = vmatprep.subr.mxu0 0.0
    %581 = vmatpush1.msra.mxu0 0.0
    %582 = vmatprep.subr.mxu0 0.0
    %583 = vmatpush1.msra.mxu0 0.0
    %584 = vmatprep.subr.mxu0 0.0
    %585 = vmatpush1.msra.mxu0 0.0
    %586 = vmatprep.mubr.f32.mxu0 0.0
    %587 = vmatmul.mubr.f32.gmra.mrb[0].mxu0 %v517
    %v588 = vpop.f32.mrb[0].mxu0
    %v589 = vadd.f32 0.0, %v588
    %v590 = vpop.f32.mrb[0].mxu0
    %591 = vmatprep.mubr.f32.mxu0 0.0
    %592 = vmatmul.mubr.f32.gmra.mrb[0].mxu0 %v520
    %v593 = vpop.f32.mrb[0].mxu0
    %v594 = vadd.f32 0.0, %v593
    %v595 = vpop.f32.mrb[0].mxu0
    %596 = vdwg.mxu0
    %v597 = vadd.f32 %v130, %v589
    %v598 = vadd.f32 %v131, %v594
    %v600 = vsel %vm257, %v499, 0
    %v603 = vsel %vm257, %v504, 0
    %605 = vmatprep.subr.mxu0 0.0
    %606 = vmatpush1.msra.mxu0 %v511
    %607 = vmatprep.subr.mxu0 0.0
    %608 = vmatpush1.msra.mxu0 %v512
    %609 = vmatprep.subr.mxu0 0.0
    %610 = vmatpush1.msra.mxu0 %v513
    %611 = vmatprep.subr.mxu0 0.0
    %612 = vmatpush1.msra.mxu0 %v514
    %613 = vmatprep.subr.mxu0 0.0
    %614 = vmatpush1.msra.mxu0 0.0
    %615 = vmatprep.subr.mxu0 0.0
    %616 = vmatpush1.msra.mxu0 0.0
    %617 = vmatprep.subr.mxu0 0.0
    %618 = vmatpush1.msra.mxu0 0.0
    %619 = vmatprep.subr.mxu0 0.0
    %620 = vmatpush1.msra.mxu0 0.0
    %621 = vmatprep.subr.mxu0 0.0
    %622 = vmatpush1.msra.mxu0 0.0
    %623 = vmatprep.subr.mxu0 0.0
    %624 = vmatpush1.msra.mxu0 0.0
    %625 = vmatprep.subr.mxu0 0.0
    %626 = vmatpush1.msra.mxu0 0.0
    %627 = vmatprep.subr.mxu0 0.0
    %628 = vmatpush1.msra.mxu0 0.0
    %629 = vmatprep.subr.mxu0 0.0
    %630 = vmatpush1.msra.mxu0 0.0
    %631 = vmatprep.subr.mxu0 0.0
    %632 = vmatpush1.msra.mxu0 0.0
    %633 = vmatprep.subr.mxu0 0.0
    %634 = vmatpush1.msra.mxu0 0.0
    %635 = vmatprep.subr.mxu0 0.0
    %636 = vmatpush1.msra.mxu0 0.0
    %637 = vmatprep.subr.mxu0 0.0
    %638 = vmatpush1.msra.mxu0 0.0
    %639 = vmatprep.subr.mxu0 0.0
    %640 = vmatpush1.msra.mxu0 0.0
    %641 = vmatprep.subr.mxu0 0.0
    %642 = vmatpush1.msra.mxu0 0.0
    %643 = vmatprep.subr.mxu0 0.0
    %644 = vmatpush1.msra.mxu0 0.0
    %645 = vmatprep.subr.mxu0 0.0
    %646 = vmatpush1.msra.mxu0 0.0
    %647 = vmatprep.subr.mxu0 0.0
    %648 = vmatpush1.msra.mxu0 0.0
    %649 = vmatprep.subr.mxu0 0.0
    %650 = vmatpush1.msra.mxu0 0.0
    %651 = vmatprep.subr.mxu0 0.0
    %652 = vmatpush1.msra.mxu0 0.0
    %653 = vmatprep.subr.mxu0 0.0
    %654 = vmatpush1.msra.mxu0 0.0
    %655 = vmatprep.subr.mxu0 0.0
    %656 = vmatpush1.msra.mxu0 0.0
    %657 = vmatprep.subr.mxu0 0.0
    %658 = vmatpush1.msra.mxu0 0.0
    %659 = vmatprep.subr.mxu0 0.0
    %660 = vmatpush1.msra.mxu0 0.0
    %661 = vmatprep.subr.mxu0 0.0
    %662 = vmatpush1.msra.mxu0 0.0
    %663 = vmatprep.subr.mxu0 0.0
    %664 = vmatpush1.msra.mxu0 0.0
    %665 = vmatprep.subr.mxu0 0.0
    %666 = vmatpush1.msra.mxu0 0.0
    %667 = vmatprep.subr.mxu0 0.0
    %668 = vmatpush1.msra.mxu0 0.0
    %669 = vmatprep.mubr.f32.mxu0 0.0
    %670 = vmatmul.mubr.f32.gmra.mrb[0].mxu0 %v600
    %v671 = vpop.f32.mrb[0].mxu0
    %v672 = vadd.f32 0.0, %v671
    %v673 = vpop.f32.mrb[0].mxu0
    %674 = vmatprep.mubr.f32.mxu0 0.0
    %675 = vmatmul.mubr.f32.gmra.mrb[0].mxu0 %v603
    %v676 = vpop.f32.mrb[0].mxu0
    %v677 = vadd.f32 0.0, %v676
    %v678 = vpop.f32.mrb[0].mxu0
    %679 = vdwg.mxu0
    %v680 = vadd.f32 %v597, %v672
    %v681 = vadd.f32 %v598, %v677
    %v682 = vlaneseq
    %v683 = vshrl.u32 %v682, 7
    %v684 = vsub.s32 0, %v683
    %v685 = vrot.slane %v515, %v684
    %v686 = vadd.f32 %v680, %v685
    %v687 = vadd.f32 %v681, %v685
    %v688 = vtanh.pop %v686
    %v689 = vtanh.pop %v687
    %v690 = vld [vmem:[#allocation4 + $0xa8] sm:$0xff]
    %v691 = vld [vmem:[#allocation4 + $0xb0] sm:$0xff]
    %v692 = vld [vmem:[#allocation4 + $0xb8] sm:$0xff]
    %v693 = vld [vmem:[#allocation4 + $0xc0] sm:$0xff]
    %v694 = vld [vmem:[#allocation4 + $0xc8] sm:$0x1]
    %v695 = vlaneseq
    %v696 = vshrl.u32 %v695, 7
    %v697 = vsub.s32 0, %v696
    %v698 = vrot.slane %v694, %v697
    %v700 = vsel %vm257, %v688, 0
    %v703 = vsel %vm257, %v689, 0
    %705 = vmatprep.subr.mxu0 0.0
    %706 = vmatpush1.msra.mxu0 %v690
    %707 = vmatprep.subr.mxu0 0.0
    %708 = vmatpush1.msra.mxu0 %v691
    %709 = vmatprep.subr.mxu0 0.0
    %710 = vmatpush1.msra.mxu0 %v692
    %711 = vmatprep.subr.mxu0 0.0
    %712 = vmatpush1.msra.mxu0 %v693
    %713 = vmatprep.subr.mxu0 0.0
    %714 = vmatpush1.msra.mxu0 0.0
    %715 = vmatprep.subr.mxu0 0.0
    %716 = vmatpush1.msra.mxu0 0.0
    %717 = vmatprep.subr.mxu0 0.0
    %718 = vmatpush1.msra.mxu0 0.0
    %719 = vmatprep.subr.mxu0 0.0
    %720 = vmatpush1.msra.mxu0 0.0
    %721 = vmatprep.subr.mxu0 0.0
    %722 = vmatpush1.msra.mxu0 0.0
    %723 = vmatprep.subr.mxu0 0.0
    %724 = vmatpush1.msra.mxu0 0.0
    %725 = vmatprep.subr.mxu0 0.0
    %726 = vmatpush1.msra.mxu0 0.0
    %727 = vmatprep.subr.mxu0 0.0
    %728 = vmatpush1.msra.mxu0 0.0
    %729 = vmatprep.subr.mxu0 0.0
    %730 = vmatpush1.msra.mxu0 0.0
    %731 = vmatprep.subr.mxu0 0.0
    %732 = vmatpush1.msra.mxu0 0.0
    %733 = vmatprep.subr.mxu0 0.0
    %734 = vmatpush1.msra.mxu0 0.0
    %735 = vmatprep.subr.mxu0 0.0
    %736 = vmatpush1.msra.mxu0 0.0
    %737 = vmatprep.subr.mxu0 0.0
    %738 = vmatpush1.msra.mxu0 0.0
    %739 = vmatprep.subr.mxu0 0.0
    %740 = vmatpush1.msra.mxu0 0.0
    %741 = vmatprep.subr.mxu0 0.0
    %742 = vmatpush1.msra.mxu0 0.0
    %743 = vmatprep.subr.mxu0 0.0
    %744 = vmatpush1.msra.mxu0 0.0
    %745 = vmatprep.subr.mxu0 0.0
    %746 = vmatpush1.msra.mxu0 0.0
    %747 = vmatprep.subr.mxu0 0.0
    %748 = vmatpush1.msra.mxu0 0.0
    %749 = vmatprep.subr.mxu0 0.0
    %750 = vmatpush1.msra.mxu0 0.0
    %751 = vmatprep.subr.mxu0 0.0
    %752 = vmatpush1.msra.mxu0 0.0
    %753 = vmatprep.subr.mxu0 0.0
    %754 = vmatpush1.msra.mxu0 0.0
    %755 = vmatprep.subr.mxu0 0.0
    %756 = vmatpush1.msra.mxu0 0.0
    %757 = vmatprep.subr.mxu0 0.0
    %758 = vmatpush1.msra.mxu0 0.0
    %759 = vmatprep.subr.mxu0 0.0
    %760 = vmatpush1.msra.mxu0 0.0
    %761 = vmatprep.subr.mxu0 0.0
    %762 = vmatpush1.msra.mxu0 0.0
    %763 = vmatprep.subr.mxu0 0.0
    %764 = vmatpush1.msra.mxu0 0.0
    %765 = vmatprep.subr.mxu0 0.0
    %766 = vmatpush1.msra.mxu0 0.0
    %767 = vmatprep.subr.mxu0 0.0
    %768 = vmatpush1.msra.mxu0 0.0
    %769 = vmatprep.mubr.f32.mxu0 0.0
    %770 = vmatmul.mubr.f32.gmra.mrb[0].mxu0 %v700
    %v771 = vpop.f32.mrb[0].mxu0
    %v772 = vadd.f32 %v698, %v771
    %v773 = vpop.f32.mrb[0].mxu0
    %774 = vmatprep.mubr.f32.mxu0 0.0
    %775 = vmatmul.mubr.f32.gmra.mrb[0].mxu0 %v703
    %v776 = vpop.f32.mrb[0].mxu0
    %v777 = vadd.f32 %v698, %v776
    %v778 = vpop.f32.mrb[0].mxu0
    %779 = vdwg.mxu0
    %780 = vmax.xlane.f32.xlu0 %v772
    %v781 = vpop.xlane.xlu0 %780
    %782 = vmax.xlane.f32.xlu0 %v777
    %v783 = vpop.xlane.xlu0 %782
    %v784 = vsub.f32 %v772, %v781
    %v785 = vsub.f32 %v777, %v783
    %v786 = vmul.f32 %v784, 1.442695
    %v787 = vpow.pop %v786
    %v788 = vmul.f32 %v785, 1.442695
    %v789 = vpow.pop %v788
    %790 = vadd.xlane.f32.xlu0 %v787
    %v791 = vpop.xlane.xlu0 %790
    %792 = vadd.xlane.f32.xlu0 %v789
    %v793 = vpop.xlane.xlu0 %792
    %v794 = vlog2.pop %v791
    %v795 = vmul.f32 %v794, 0.6931472
    %v796 = vlog2.pop %v793
    %v797 = vmul.f32 %v796, 0.6931472
    %v798 = vadd.f32 %v781, %v795
    %v799 = vadd.f32 %v783, %v797
    %v800 = vsub.f32 %v772, %v798
    %v801 = vsub.f32 %v777, %v799
    %v802 = vld [vmem:[#allocation4 + $0xa0] sm:$0x7]
    %v803 = vlaneseq
    %v804 = vshrl.u32 %v803, 7
    %v805 = vsub.s32 0, %v804
    %v806 = vrot.slane %v802, %v805
    %v807 = vmul.f32 %v688, %v806
    %v808 = vmul.f32 %v689, %v806
    %v809 = vsel %vm257, %v807, 0.0
    %810 = vadd.xlane.f32.xlu0 %v809
    %v811 = vpop.xlane.xlu0 %810
    %v812 = vsel %vm257, %v808, 0.0
    %813 = vadd.xlane.f32.xlu0 %v812
    %v814 = vpop.xlane.xlu0 %813
    %v815 = vlaneseq
    %v816 = vshrl.u32 %v815, 7
    %v817 = vsub.s32 1, %v816
    %v818 = vrot.slane %v802, %v817
    %v819 = vmul.f32 %v499, %v818
    %v820 = vmul.f32 %v504, %v818
    %v821 = vsel %vm257, %v819, 0.0
    %822 = vadd.xlane.f32.xlu0 %v821
    %v823 = vpop.xlane.xlu0 %822
    %v824 = vsel %vm257, %v820, 0.0
    %825 = vadd.xlane.f32.xlu0 %v824
    %v826 = vpop.xlane.xlu0 %825
    %v827 = vadd.f32 %v811, %v823
    %v828 = vadd.f32 %v814, %v826
    %v829 = vlaneseq
    %v830 = vshrl.u32 %v829, 7
    %v831 = vsub.s32 2, %v830
    %v832 = vrot.slane %v802, %v831
    %v833 = vadd.f32 %v827, %v832
    %v834 = vadd.f32 %v828, %v832
    %837 = vrot.lane.b32.xlu0 %v833, 6
    %v838 = vpop.permute.xlu0 %837
    %839 = vrot.lane.b32.xlu0 %v834, 6
    %v840 = vpop.permute.xlu0 %839
    %843 = vrot.lane.b32.xlu0 %v499, 7
    %v844 = vpop.permute.xlu0 %843
    %845 = vrot.lane.b32.xlu0 %v504, 7
    %v846 = vpop.permute.xlu0 %845
    %vm849 = vcmask 48128
    %v850 = vsel %vm849, %v800, %v838
    %v851 = vsel %vm849, %v801, %v840
    %vm852 = vcmask 56320
    %v853 = vsel %vm852, %v850, %v844
    %v854 = vsel %vm852, %v851, %v846
    %vm855 = vcmask 318464
    %v856 = vsel %vm855, %v853, 0.0
    %v857 = vsel %vm855, %v854, 0.0
    %858 = vst [vmem:[%s2] sm:$0xff] %v856
    %859 = vst [vmem:[%s2 + $0x8] sm:$0xff] %v857
    // Predicated region
    $region18: #{commnet_forward.1} parent=1 // pred_check
      _
    $region19: #{commnet_forward.1} parent=1 // pred_check_branch
      %861 = sbr.rel (0) target = $region21
    $region20: #{commnet_forward.1} parent=1 // pred_region
      _
    $region21: #{commnet_forward.1} parent=1 // pred_fallthru
      _
    // Predicated region
    $region22: #{commnet_forward.1} parent=1 // pred_check
      _
    $region23: #{commnet_forward.1} parent=1 // pred_check_branch
      %863 = sbr.rel (0) target = $region25
    $region24: #{commnet_forward.1} parent=1 // pred_region
      _
    $region25: #{commnet_forward.1} parent=1 // pred_fallthru
      _
    %864 = vsyncpa [#allocation3], 1
    %865 = vsyncpa [#allocation5], 1

</llo_original>
